<compile_context>
chip_gen: v5e
topology: v5e:2x2
jax: 0.10.0
libtpu: 0.0.40
codegen_flags: <defaults>
</compile_context>

<pallas_src>
import functools

import jax
import jax.numpy as jnp
from jax.experimental import pallas as pl
from jax.experimental.pallas import tpu as pltpu


def _pick_tile(total, candidates):
    for c in candidates:
        if c <= total and total % c == 0:
            return c
    return total


def _moe_kernel(flags_ref, x_ref, w13_ref, w2_ref, cw_ref, o_ref, acc_ref, *, th):
    i = pl.program_id(0)
    e = pl.program_id(1)
    h = pl.program_id(2)
    n_e = pl.num_programs(1)
    n_h = pl.num_programs(2)

    @pl.when((e == 0) & (h == 0))
    def _():
        acc_ref[...] = jnp.zeros_like(acc_ref)

    # Skip all MXU work if no token in this tile routes to expert `e`.
    @pl.when(flags_ref[i * n_e + e] != 0)
    def _():
        x = x_ref[...]                                            # (tm, dim)
        w13 = w13_ref[0, 0]                                       # (dim, 2*th)
        w2 = w2_ref[0]                                            # (th, dim)

        # Fused w1/w3 matmul, fp32 accumulation on the MXU.
        h13 = jnp.dot(x, w13, preferred_element_type=jnp.float32)  # (tm, 2*th)
        h1 = h13[:, :th]
        h3 = h13[:, th:]
        gated = (h1 * jax.nn.sigmoid(h1)) * h3                     # fp32 SiLU gate

        part = jnp.dot(gated.astype(x.dtype), w2,
                       preferred_element_type=jnp.float32)         # (tm, dim)

        # Per-token combine weight for this expert: direct (tm, 1) load.
        acc_ref[...] += cw_ref[0] * part

    @pl.when((e == n_e - 1) & (h == n_h - 1))
    def _():
        o_ref[...] = acc_ref[...].astype(o_ref.dtype)


def moe_experts_pallas(x_flat, w1, w3, w2, combine_w, *, out_dtype=None,
                       tm=None, th=None):
    """x_flat: (T, dim); w1/w3: (E, dim, hidden); w2: (E, hidden, dim);
    combine_w: (T, E) dense fp32 per-(token, expert) combine weights."""
    T, dim = x_flat.shape
    E, _, hidden = w1.shape
    if out_dtype is None:
        out_dtype = x_flat.dtype

    # Token tile: large enough to amortize weight streaming, small enough that
    # T//tm >= 2 can feed both v7x TensorCores on real T.
    if tm is None:
        tm = _pick_tile(T, (256, 128, 64, 32, 16, 8))
    # Hidden tile: keeps double-buffered weight tiles inside the VMEM budget
    # on every generation (incl. v7x's 64 MiB).
    if th is None:
        th = _pick_tile(hidden, (512, 256, 128))
    assert T % tm == 0 and hidden % th == 0
    n_i = T // tm
    n_h = hidden // th

    # One-time layout work (plain JAX, HBM): fuse w1/w3 per hidden tile so the
    # kernel does a single (tm, dim) @ (dim, 2*th) matmul per step.
    w1r = w1.reshape(E, dim, n_h, th).transpose(0, 2, 1, 3)   # (E, n_h, dim, th)
    w3r = w3.reshape(E, dim, n_h, th).transpose(0, 2, 1, 3)
    w13 = jnp.concatenate([w1r, w3r], axis=-1)                # (E, n_h, dim, 2*th)

    # Combine weights as (E, T, 1) so the kernel loads (tm, 1) directly.
    cw_t = combine_w.astype(jnp.float32).T[..., None]

    # Per-(token-tile, expert) "any token routed here" flags -> SMEM (1-D).
    flags = jnp.any(combine_w.reshape(n_i, tm, E) > 0.0, axis=1)
    flags = flags.astype(jnp.int32).reshape(-1)

    # Explicit VMEM budget from the actual tile sizes (double-buffered inputs
    # + output + fp32 accumulator), with headroom.
    cbytes = jnp.dtype(x_flat.dtype).itemsize
    obytes = jnp.dtype(out_dtype).itemsize
    vmem_est = (2 * tm * dim * cbytes            # x
                + 2 * dim * 2 * th * cbytes      # fused w13 tile
                + 2 * th * dim * cbytes          # w2 tile
                + 2 * tm * 4                     # combine weights
                + 2 * tm * dim * obytes          # output tile
                + tm * dim * 4)                  # fp32 accumulator
    vmem_limit = min(110 << 20, max(32 << 20, int(vmem_est * 3 // 2) + (2 << 20)))

    grid = (n_i, E, n_h)
    out = pl.pallas_call(
        functools.partial(_moe_kernel, th=th),
        out_shape=jax.ShapeDtypeStruct((T, dim), out_dtype),
        grid_spec=pltpu.PrefetchScalarGridSpec(
            num_scalar_prefetch=1,
            grid=grid,
            in_specs=[
                pl.BlockSpec((tm, dim), lambda i, e, h, fl: (i, 0)),              # x
                pl.BlockSpec((1, 1, dim, 2 * th), lambda i, e, h, fl: (e, h, 0, 0)),  # w13
                pl.BlockSpec((1, th, dim), lambda i, e, h, fl: (e, h, 0)),        # w2
                pl.BlockSpec((1, tm, 1), lambda i, e, h, fl: (e, i, 0)),          # combine_w
            ],
            out_specs=pl.BlockSpec((tm, dim), lambda i, e, h, fl: (i, 0)),
            scratch_shapes=[pltpu.VMEM((tm, dim), jnp.float32)],
        ),
        compiler_params=pltpu.CompilerParams(
            dimension_semantics=("parallel", "arbitrary", "arbitrary"),
            vmem_limit_bytes=vmem_limit),
    )(flags, x_flat, w13, w2, cw_t)
    return out


def moe_forward(x, wg, w1, w3, w2, num_experts_per_tok, *,
                compute_dtype=None, tm=None, th=None):
    """Full MoE forward (eval mode: no load-balancing loss).

    x: (..., dim). Returns same shape/dtype as x. Set compute_dtype=bf16 to
    run the matmuls in bf16 (fp32 gating + fp32 accumulation kept).
    """
    orig_shape = x.shape
    dim = x.shape[-1]
    out_dtype = x.dtype
    x_flat = x.reshape(-1, dim)
    E = wg.shape[1]
    k = num_experts_per_tok

    # --- gating glue (plain JAX, fp32 end-to-end: softmax, top-k, renorm) ---
    scores = jnp.dot(x_flat.astype(jnp.float32), wg.astype(jnp.float32),
                     preferred_element_type=jnp.float32)
    scores = jax.nn.softmax(scores, axis=-1)                        # (T, E) fp32
    expert_weights, expert_indices = jax.lax.top_k(scores, k)       # (T, k)
    expert_weights = expert_weights / jnp.sum(expert_weights, axis=-1,
                                              keepdims=True)
    # Dense combine weights: cw[t, e] = sum_k w[t, k] * [idx[t, k] == e].
    onehot = expert_indices[..., None] == jnp.arange(E)[None, None, :]
    combine_w = jnp.sum(jnp.where(onehot, expert_weights[..., None], 0.0),
                        axis=1)                                     # (T, E) fp32

    # --- hot path in Pallas (optionally bf16 MXU operands) ---
    if compute_dtype is None:
        compute_dtype = x.dtype
    y = moe_experts_pallas(x_flat.astype(compute_dtype),
                           w1.astype(compute_dtype),
                           w3.astype(compute_dtype),
                           w2.astype(compute_dtype),
                           combine_w, out_dtype=out_dtype, tm=tm, th=th)
    return y.reshape(orig_shape)


def _reference_moe(x, wg, w1, w3, w2, k):
    """Pure-JAX fp32 reference mirroring the PyTorch masked per-expert loop."""
    dim = x.shape[-1]
    x_flat = x.reshape(-1, dim)
    E = wg.shape[1]
    scores = jax.nn.softmax(x_flat @ wg, axis=-1)
    ew, ei = jax.lax.top_k(scores, k)
    ew = ew / jnp.sum(ew, axis=-1, keepdims=True)                 # (T, k)

    def ffn(xx, a, b, c):
        h1 = xx @ a
        h3 = xx @ b
        return ((h1 * jax.nn.sigmoid(h1)) * h3) @ c

    outs = jnp.stack([ffn(x_flat, w1[e], w3[e], w2[e]) for e in range(E)],
                     axis=1)                                       # (T, E, dim)
    sel = jnp.take_along_axis(outs, ei[..., None], axis=1)         # (T, k, dim)
    y = jnp.sum(sel * ew[..., None], axis=1)                       # (T, dim)
    return y.reshape(x.shape)


if __name__ == "__main__":
    # Small, module-consistent shapes.
    B, S, dim, hidden = 2, 8, 32, 64
    num_experts, num_experts_per_tok = 4, 2

    key = jax.random.PRNGKey(0)
    kx, kg, k1, k3, k2 = jax.random.split(key, 5)

    x = jax.random.normal(kx, (B, S, dim), dtype=jnp.float32)
    # Deterministic synthetic parameters (math layout, see header comment).
    wg = jax.random.normal(kg, (dim, num_experts), dtype=jnp.float32) * 0.1
    w1 = jax.random.normal(k1, (num_experts, dim, hidden), dtype=jnp.float32) * 0.1
    w3 = jax.random.normal(k3, (num_experts, dim, hidden), dtype=jnp.float32) * 0.1
    w2 = jax.random.normal(k2, (num_experts, hidden, dim), dtype=jnp.float32) * 0.1

    y_ref = _reference_moe(x, wg, w1, w3, w2, num_experts_per_tok)

    # fp32 hot path: bit-for-bit-ish vs reference.
    y = moe_forward(x, wg, w1, w3, w2, num_experts_per_tok)
    y = jax.block_until_ready(y)
    assert y.shape == x.shape and y.dtype == x.dtype
    assert jnp.allclose(y, y_ref, atol=1e-5, rtol=1e-5), "fp32 mismatch vs reference"

    # bf16 hot path (production config: bf16 MXU, fp32 gating/SiLU/accumulate).
    y_bf16 = moe_forward(x, wg, w1, w3, w2, num_experts_per_tok,
                         compute_dtype=jnp.bfloat16)
    y_bf16 = jax.block_until_ready(y_bf16)
    assert y_bf16.shape == x.shape and y_bf16.dtype == x.dtype
    assert jnp.allclose(y_bf16, y_ref, atol=7.5e-2, rtol=7.5e-2), \
        "bf16 mismatch vs reference"

    # TODO(synk): training-time load-balancing loss and model-parallel
    # copy/reduce regions are identity / omitted in this single-device,
    # eval-mode kernel.
    print("KERNEL_OK")
</pallas_src>

<mosaic_0001>
module attributes {stable_mosaic.version = 11 : i64} {
  func.func @_moe_kernel(%arg0: i32, %arg1: i32, %arg2: i32, %arg3: memref<4xi32, #tpu.memory_space<smem>>, %arg4: memref<16x32xf32, #tpu.memory_space<vmem>>, %arg5: memref<1x1x32x128xf32, #tpu.memory_space<vmem>>, %arg6: memref<1x64x32xf32, #tpu.memory_space<vmem>>, %arg7: memref<1x16x1xf32, #tpu.memory_space<vmem>>, %arg8: memref<16x32xf32, #tpu.memory_space<vmem>>, %arg9: memref<16x32xf32, #tpu.memory_space<vmem>>) attributes {dimension_semantics = [#tpu.dimension_semantics<parallel>, #tpu.dimension_semantics<arbitrary>, #tpu.dimension_semantics<arbitrary>], iteration_bounds = array<i64: 1, 4, 1>, scalar_prefetch = 1 : i64, scratch_operands = 1 : i64, tpu.core_type = #tpu.core_type<tc>, window_params = [{transform_indices = @transform_0, window_bounds = array<i64: 16, 32>}, {transform_indices = @transform_1, window_bounds = array<i64: 1, 1, 32, 128>}, {transform_indices = @transform_2, window_bounds = array<i64: 1, 64, 32>}, {transform_indices = @transform_3, window_bounds = array<i64: 1, 16, 1>}, {transform_indices = @transform_4, window_bounds = array<i64: 16, 32>}]} {
    %c0_i32 = arith.constant 0 : i32
    %0 = arith.cmpi eq, %arg1, %c0_i32 : i32
    %c0_i32_0 = arith.constant 0 : i32
    %1 = arith.cmpi eq, %arg2, %c0_i32_0 : i32
    %2 = arith.andi %0, %1 : i1
    %3 = arith.extui %2 : i1 to i32
    %c0_i32_1 = arith.constant 0 : i32
    %4 = arith.cmpi ne, %3, %c0_i32_1 : i32
    scf.if %4 {
      %cst = arith.constant 0.000000e+00 : f32
      %17 = vector.broadcast %cst : f32 to vector<16x32xf32>
      %c0 = arith.constant 0 : index
      %c0_6 = arith.constant 0 : index
      %18 = vector.load %arg9[%c0, %c0_6] : memref<16x32xf32, #tpu.memory_space<vmem>>, vector<16x32xf32>
      tpu.vector_store %arg9[%c0, %c0_6], %17 {strides = array<i32>} : memref<16x32xf32, #tpu.memory_space<vmem>>, vector<16x32xf32>,
    } else {
    }
    %c4_i32 = arith.constant 4 : i32
    %5 = arith.muli %arg0, %c4_i32 : i32
    %6 = arith.addi %5, %arg1 : i32
    %7 = arith.index_cast %6 : i32 to index
    %8 = memref.load %arg3[%7] : memref<4xi32, #tpu.memory_space<smem>>
    %c0_i32_2 = arith.constant 0 : i32
    %9 = arith.cmpi ne, %8, %c0_i32_2 : i32
    %10 = arith.extui %9 : i1 to i32
    %c0_i32_3 = arith.constant 0 : i32
    %11 = arith.cmpi ne, %10, %c0_i32_3 : i32
    scf.if %11 {
      %c0 = arith.constant 0 : index
      %c0_6 = arith.constant 0 : index
      %17 = vector.load %arg4[%c0, %c0_6] : memref<16x32xf32, #tpu.memory_space<vmem>>, vector<16x32xf32>
      %c0_7 = arith.constant 0 : index
      %c0_8 = arith.constant 0 : index
      %c0_9 = arith.constant 0 : index
      %c0_10 = arith.constant 0 : index
      %18 = vector.load %arg5[%c0_7, %c0_8, %c0_9, %c0_10] : memref<1x1x32x128xf32, #tpu.memory_space<vmem>>, vector<1x1x32x128xf32>
      %19 = vector.shape_cast %18 : vector<1x1x32x128xf32> to vector<32x128xf32>
      %c0_11 = arith.constant 0 : index
      %c0_12 = arith.constant 0 : index
      %c0_13 = arith.constant 0 : index
      %20 = vector.load %arg6[%c0_11, %c0_12, %c0_13] : memref<1x64x32xf32, #tpu.memory_space<vmem>>, vector<1x64x32xf32>
      %21 = vector.shape_cast %20 : vector<1x64x32xf32> to vector<64x32xf32>
      %cst = arith.constant dense<0.000000e+00> : vector<16x128xf32>
      %22 = tpu.matmul %17, %19, %cst {dimension_numbers = #tpu.dot_dimension_numbers<[1], [0], [0], [1], [0, 0, 1, 1], [], []>} : vector<16x32xf32>, vector<32x128xf32>, vector<16x128xf32> -> vector<16x128xf32>
      %23 = vector.extract_strided_slice %22 {offsets = [0, 0], sizes = [16, 64], strides = [1, 1]} : vector<16x128xf32> to vector<16x64xf32>
      %24 = vector.extract_strided_slice %22 {offsets = [0, 64], sizes = [16, 64], strides = [1, 1]} : vector<16x128xf32> to vector<16x64xf32>
      %25 = arith.negf %23 : vector<16x64xf32>
      %26 = math.exp %25 : vector<16x64xf32>
      %cst_14 = arith.constant 1.000000e+00 : f32
      %27 = vector.broadcast %cst_14 : f32 to vector<16x64xf32>
      %28 = arith.addf %27, %26 : vector<16x64xf32>
      %29 = arith.divf %27, %28 : vector<16x64xf32>
      %30 = arith.mulf %23, %29 : vector<16x64xf32>
      %31 = arith.mulf %30, %24 : vector<16x64xf32>
      %cst_15 = arith.constant dense<0.000000e+00> : vector<16x32xf32>
      %32 = tpu.matmul %31, %21, %cst_15 {dimension_numbers = #tpu.dot_dimension_numbers<[1], [0], [0], [1], [0, 0, 1, 1], [], []>} : vector<16x64xf32>, vector<64x32xf32>, vector<16x32xf32> -> vector<16x32xf32>
      %c0_16 = arith.constant 0 : index
      %c0_17 = arith.constant 0 : index
      %33 = vector.load %arg9[%c0_16, %c0_17] : memref<16x32xf32, #tpu.memory_space<vmem>>, vector<16x32xf32>
      %c0_18 = arith.constant 0 : index
      %c0_19 = arith.constant 0 : index
      %c0_20 = arith.constant 0 : index
      %34 = vector.load %arg7[%c0_18, %c0_19, %c0_20] : memref<1x16x1xf32, #tpu.memory_space<vmem>>, vector<1x16x1xf32>
      %35 = vector.shape_cast %34 : vector<1x16x1xf32> to vector<16x1xf32>
      %36 = vector.broadcast %35 : vector<16x1xf32> to vector<16x32xf32>
      %37 = arith.mulf %36, %32 : vector<16x32xf32>
      %38 = arith.addf %33, %37 : vector<16x32xf32>
      %c0_21 = arith.constant 0 : index
      %c0_22 = arith.constant 0 : index
      %39 = vector.load %arg9[%c0_21, %c0_22] : memref<16x32xf32, #tpu.memory_space<vmem>>, vector<16x32xf32>
      tpu.vector_store %arg9[%c0_21, %c0_22], %38 {strides = array<i32>} : memref<16x32xf32, #tpu.memory_space<vmem>>, vector<16x32xf32>,
    } else {
    }
    %c3_i32 = arith.constant 3 : i32
    %12 = arith.cmpi eq, %arg1, %c3_i32 : i32
    %c0_i32_4 = arith.constant 0 : i32
    %13 = arith.cmpi eq, %arg2, %c0_i32_4 : i32
    %14 = arith.andi %12, %13 : i1
    %15 = arith.extui %14 : i1 to i32
    %c0_i32_5 = arith.constant 0 : i32
    %16 = arith.cmpi ne, %15, %c0_i32_5 : i32
    scf.if %16 {
      %c0 = arith.constant 0 : index
      %c0_6 = arith.constant 0 : index
      %17 = vector.load %arg9[%c0, %c0_6] : memref<16x32xf32, #tpu.memory_space<vmem>>, vector<16x32xf32>
      %c0_7 = arith.constant 0 : index
      %c0_8 = arith.constant 0 : index
      %18 = vector.load %arg8[%c0_7, %c0_8] : memref<16x32xf32, #tpu.memory_space<vmem>>, vector<16x32xf32>
      tpu.vector_store %arg8[%c0_7, %c0_8], %17 {strides = array<i32>} : memref<16x32xf32, #tpu.memory_space<vmem>>, vector<16x32xf32>,
    } else {
    }
    return
  }
  func.func @transform_0(%arg0: i32, %arg1: i32, %arg2: i32, %arg3: memref<4xi32, #tpu.memory_space<smem>>) -> (i32, i32) {
    %c0_i32 = arith.constant 0 : i32
    %c0_i32_0 = arith.constant 0 : i32
    return %arg0, %c0_i32 : i32, i32
  }
  func.func @transform_1(%arg0: i32, %arg1: i32, %arg2: i32, %arg3: memref<4xi32, #tpu.memory_space<smem>>) -> (i32, i32, i32, i32) {
    %c0_i32 = arith.constant 0 : i32
    %c0_i32_0 = arith.constant 0 : i32
    %c0_i32_1 = arith.constant 0 : i32
    return %arg1, %arg2, %c0_i32, %c0_i32_0 : i32, i32, i32, i32
  }
  func.func @transform_2(%arg0: i32, %arg1: i32, %arg2: i32, %arg3: memref<4xi32, #tpu.memory_space<smem>>) -> (i32, i32, i32) {
    %c0_i32 = arith.constant 0 : i32
    %c0_i32_0 = arith.constant 0 : i32
    return %arg1, %arg2, %c0_i32 : i32, i32, i32
  }
  func.func @transform_3(%arg0: i32, %arg1: i32, %arg2: i32, %arg3: memref<4xi32, #tpu.memory_space<smem>>) -> (i32, i32, i32) {
    %c0_i32 = arith.constant 0 : i32
    %c0_i32_0 = arith.constant 0 : i32
    return %arg1, %arg0, %c0_i32 : i32, i32, i32
  }
  func.func @transform_4(%arg0: i32, %arg1: i32, %arg2: i32, %arg3: memref<4xi32, #tpu.memory_space<smem>>) -> (i32, i32) {
    %c0_i32 = arith.constant 0 : i32
    %c0_i32_0 = arith.constant 0 : i32
    return %arg0, %c0_i32 : i32, i32
  }
}

</mosaic_0001>

<llo_original>
// kernel: tpu_custom_call.1
$region0: #{tpu_custom_call.1}
  #allocation0 [shape = 'u32[]', space=smem, size = 0x4, offset = 0x4, fixed_abs, tag = 'smem constant byte address 0x4 - core index']
  #allocation1 [shape = 'u32[72,128]{1,0:T(1,128)}', space=vmem, size = 0x9000, scoped, tag = 'internal scratch']
  #allocation2 [shape = 'f32[16,32]{1,0:T(8,128)}', space=vmem, size = 0x2000, scoped, tag = 'scratch operand']
  #allocation3 [shape = 's32[1]{0}', space=sflag, size = 0x4, scoped, tag = 'scoped memory for tpu_custom_call.1']
  #allocation4 [shape = 'u8[512]{0}', space=smem, size = 0x200, scoped, tag = 'prefetched SMEM operand 0']
  %s0 = inlined_call_operand.vmem [shape: s32[4], index: 0, kind: input, shape index: {}]
  %s1 = inlined_call_operand.vmem [shape: f32[16,32], index: 1, kind: input, shape index: {}]
  %s2 = inlined_call_operand.vmem [shape: f32[4,1,32,128], index: 2, kind: input, shape index: {}]
  %s3 = inlined_call_operand.vmem [shape: f32[4,64,32], index: 3, kind: input, shape index: {}]
  %s4 = inlined_call_operand.vmem [shape: f32[4,16,1], index: 4, kind: input, shape index: {}]
  %s5 = inlined_call_operand.hbm [shape: f32[16,32], index: 5, kind: output, shape index: {}]
  %s6 = sld [smem:[#allocation0]]
  $region61: #{tpu_custom_call.1} parent=0
    _
  %s8 = ssub.s32 1, %s6
  %s9 = scalar_select 0, %s8, %s6
  %s11 = sshll.u32 %s0, 4
  %s12 = int_to_ptr.vmem [resolvable:$true] %s11
  %14 = dma.vmem_to_smem %s12, 16, [#allocation4], [#allocation3]
  %16 = dma.done [#allocation3], 16
  %17 = sfence
  $region1: #{tpu_custom_call.1} parent=0
    #allocation5 [shape = 'u8[8192]{0}', space=vmem, size = 0x2000, scoped, tag = 'output window, operand 0, single buffered']
    #allocation6 [shape = 's32[2]{0}', space=sflag, size = 0x8, scoped, tag = 'scoped memory for tpu_custom_call.1']
    %18 = vsyncpa [#allocation6], 0
    loop: start=0, step=1, limit=6
    $region2: #{tpu_custom_call.1} parent=1 // loop_pre_header
      _
    $region3: #{tpu_custom_call.1} parent=1 // loop_header
      %s20 = sphi 0, %s24
      %p21 = scmp.ge.s32.totalorder %s20, 6
      %s27 = sphi 0, %s46
      %s28 = sphi 0, %s42
      %s29 = sphi 0, %s38
      %s30 = sphi 0, %s27
      %s31 = sphi 0, %s28
      %s32 = sphi 0, %s29
      %s33 = sphi 0, %s30
      %s34 = sphi 0, %s31
      %s35 = sphi 0, %s32
      %s49 = sphi 0, %s51
      %s52 = sphi 0, %s49
      %s53 = sphi 0, %s52
      %s69 = sphi 0, %s53
      %s77 = sphi 0, %s79
      %s80 = sphi 0, %s77
      %s81 = sphi 0, %s80
      %s97 = sphi 0, %s81
      %s105 = sphi 0, %s107
      %s108 = sphi 0, %s105
      %s109 = sphi 0, %s108
      %s125 = sphi 0, %s109
      %s133 = sphi 0, %s135
      %s136 = sphi 0, %s133
      %s137 = sphi 0, %s136
      %s153 = sphi 0, %s137
      %s159 = sphi 0, %s161
      %s162 = sphi 0, %s159
      %s163 = sphi 0, %s162
      %s179 = sphi 0, %s163
    $region4: #{tpu_custom_call.1} parent=1 // loop_header_branch
      %23 = sbr.rel (%p21) target = $region8
    $region5: #{tpu_custom_call.1} parent=1 // loop_body
      %s25 = ssub.s32 %s20, 1
      %s26 = ssub.s32 %s20, 2
      %s36 = sadd.s32 1, %s29
      %p37 = scmp.ge.s32.totalorder %s36, 1
      %s38 = scalar_select %p37, 0, %s36
      %s39 = sadd.s32 1, %s28
      %s40 = scalar_select %p37, %s39, %s28
      %p41 = scmp.ge.s32.totalorder %s40, 4
      %s42 = scalar_select %p41, 0, %s40
      %s43 = sadd.s32 1, %s27
      %s44 = scalar_select %p41, %s43, %s27
      %p45 = scmp.ge.s32.totalorder %s44, 1
      %s46 = scalar_select %p45, 0, %s44
      %s47 = ssub.s32 %s27, %s46
      %p48 = scmp.eq.s32.totalorder %s47, 0
      %s50 = sadd.s32 %s49, 1
      %s51 = scalar_select %p48, %s49, %s50
      %p54 = pneg %p48
      %p55 = scmp.eq.s32.totalorder %s20, 3
      %p56 = por %p54, %p55
      %p57 = scmp.ne.s32.totalorder %s49, %s52
      %p58 = scmp.eq.s32.totalorder %s20, 0
      %p59 = por %p57, %p58
      %p60 = scmp.ne.s32.totalorder %s49, %s52
      %p61 = scmp.eq.s32.totalorder %s25, 3
      %p62 = por %p60, %p61
      %p63 = scmp.ne.s32.totalorder %s52, %s53
      %p64 = scmp.eq.s32.totalorder %s25, 0
      %p65 = por %p63, %p64
      %p66 = scmp.ne.s32.totalorder %s52, %s53
      %p67 = scmp.eq.s32.totalorder %s26, 3
      %p68 = por %p66, %p67
      %p70 = scmp.ne.s32.totalorder %s53, %s69
      %p71 = scmp.eq.s32.totalorder %s26, 0
      %p72 = por %p70, %p71
      %s73 = ssub.s32 %s28, %s42
      %s74 = ssub.s32 %s29, %s38
      %s75 = sor.u32 %s73, %s74
      %p76 = scmp.eq.s32.totalorder %s75, 0
      %s78 = sadd.s32 %s77, 1
      %s79 = scalar_select %p76, %s77, %s78
      %p82 = pneg %p76
      %p83 = scmp.eq.s32.totalorder %s20, 3
      %p84 = por %p82, %p83
      %p85 = scmp.ne.s32.totalorder %s77, %s80
      %p86 = scmp.eq.s32.totalorder %s20, 0
      %p87 = por %p85, %p86
      %p88 = scmp.ne.s32.totalorder %s77, %s80
      %p89 = scmp.eq.s32.totalorder %s25, 3
      %p90 = por %p88, %p89
      %p91 = scmp.ne.s32.totalorder %s80, %s81
      %p92 = scmp.eq.s32.totalorder %s25, 0
      %p93 = por %p91, %p92
      %p94 = scmp.ne.s32.totalorder %s80, %s81
      %p95 = scmp.eq.s32.totalorder %s26, 3
      %p96 = por %p94, %p95
      %p98 = scmp.ne.s32.totalorder %s81, %s97
      %p99 = scmp.eq.s32.totalorder %s26, 0
      %p100 = por %p98, %p99
      %s101 = ssub.s32 %s28, %s42
      %s102 = ssub.s32 %s29, %s38
      %s103 = sor.u32 %s101, %s102
      %p104 = scmp.eq.s32.totalorder %s103, 0
      %s106 = sadd.s32 %s105, 1
      %s107 = scalar_select %p104, %s105, %s106
      %p110 = pneg %p104
      %p111 = scmp.eq.s32.totalorder %s20, 3
      %p112 = por %p110, %p111
      %p113 = scmp.ne.s32.totalorder %s105, %s108
      %p114 = scmp.eq.s32.totalorder %s20, 0
      %p115 = por %p113, %p114
      %p116 = scmp.ne.s32.totalorder %s105, %s108
      %p117 = scmp.eq.s32.totalorder %s25, 3
      %p118 = por %p116, %p117
      %p119 = scmp.ne.s32.totalorder %s108, %s109
      %p120 = scmp.eq.s32.totalorder %s25, 0
      %p121 = por %p119, %p120
      %p122 = scmp.ne.s32.totalorder %s108, %s109
      %p123 = scmp.eq.s32.totalorder %s26, 3
      %p124 = por %p122, %p123
      %p126 = scmp.ne.s32.totalorder %s109, %s125
      %p127 = scmp.eq.s32.totalorder %s26, 0
      %p128 = por %p126, %p127
      %s129 = ssub.s32 %s28, %s42
      %s130 = ssub.s32 %s27, %s46
      %s131 = sor.u32 %s129, %s130
      %p132 = scmp.eq.s32.totalorder %s131, 0
      %s134 = sadd.s32 %s133, 1
      %s135 = scalar_select %p132, %s133, %s134
      %p138 = pneg %p132
      %p139 = scmp.eq.s32.totalorder %s20, 3
      %p140 = por %p138, %p139
      %p141 = scmp.ne.s32.totalorder %s133, %s136
      %p142 = scmp.eq.s32.totalorder %s20, 0
      %p143 = por %p141, %p142
      %p144 = scmp.ne.s32.totalorder %s133, %s136
      %p145 = scmp.eq.s32.totalorder %s25, 3
      %p146 = por %p144, %p145
      %p147 = scmp.ne.s32.totalorder %s136, %s137
      %p148 = scmp.eq.s32.totalorder %s25, 0
      %p149 = por %p147, %p148
      %p150 = scmp.ne.s32.totalorder %s136, %s137
      %p151 = scmp.eq.s32.totalorder %s26, 3
      %p152 = por %p150, %p151
      %p154 = scmp.ne.s32.totalorder %s137, %s153
      %p155 = scmp.eq.s32.totalorder %s26, 0
      %p156 = por %p154, %p155
      %s157 = ssub.s32 %s27, %s46
      %p158 = scmp.eq.s32.totalorder %s157, 0
      %s160 = sadd.s32 %s159, 1
      %s161 = scalar_select %p158, %s159, %s160
      %p164 = pneg %p158
      %p165 = scmp.eq.s32.totalorder %s20, 3
      %p166 = por %p164, %p165
      %p167 = scmp.ne.s32.totalorder %s159, %s162
      %p168 = scmp.eq.s32.totalorder %s20, 0
      %p169 = por %p167, %p168
      %p170 = scmp.ne.s32.totalorder %s159, %s162
      %p171 = scmp.eq.s32.totalorder %s25, 3
      %p172 = por %p170, %p171
      %p173 = scmp.ne.s32.totalorder %s162, %s163
      %p174 = scmp.eq.s32.totalorder %s25, 0
      %p175 = por %p173, %p174
      %p176 = scmp.ne.s32.totalorder %s162, %s163
      %p177 = scmp.eq.s32.totalorder %s26, 3
      %p178 = por %p176, %p177
      %p180 = scmp.ne.s32.totalorder %s163, %s179
      %p181 = scmp.eq.s32.totalorder %s26, 0
      %p182 = por %p180, %p181
      %p183 = scmp.le.s32.totalorder 1, %s20
      %p184 = scmp.lt.s32.totalorder %s20, 5
      %p185 = pnand %p183, %p184
      %p186 = pneg %p185
      // Predicated region
      $region9: #{tpu_custom_call.1} parent=5 // pred_check
        _
      $region10: #{tpu_custom_call.1} parent=5 // pred_check_branch
        %188 = sbr.rel (%p185) target = $region12
      $region11: #{tpu_custom_call.1} parent=5 // pred_region
        %s189 = ssub.s32 %s20, 1
        // Predicated region
        $region13: #{tpu_custom_call.1} parent=11 // pred_check
          %p190 = pneg %p65
        $region14: #{tpu_custom_call.1} parent=11 // pred_check_branch
          %192 = sbr.rel (%p190) target = $region16
        $region15: #{tpu_custom_call.1} parent=11 // pred_region
          %s193 = smul.u32 2, %s30
          %p194 = scmp.lt.s32.totalorder %s193, 1
          %s195 = scalar_select %p194, %s193, 1
          %s196 = smul.addr %s195, 8
          %s197 = scalar_lea.vmem %s1, %s196
          %s198 = smul.u32 2, %s30
        $region16: #{tpu_custom_call.1} parent=11 // pred_fallthru
          _
      $region12: #{tpu_custom_call.1} parent=5 // pred_fallthru
        _
      %p199 = scmp.lt.s32.totalorder %s20, 4
      // Predicated region
      $region17: #{tpu_custom_call.1} parent=5 // pred_check
        %p200 = pneg %p199
      $region18: #{tpu_custom_call.1} parent=5 // pred_check_branch
        %202 = sbr.rel (%p200) target = $region20
      $region19: #{tpu_custom_call.1} parent=5 // pred_region
        // Predicated region
        $region21: #{tpu_custom_call.1} parent=19 // pred_check
          %p203 = pneg %p87
        $region22: #{tpu_custom_call.1} parent=19 // pred_check_branch
          %205 = sbr.rel (%p203) target = $region24
        $region23: #{tpu_custom_call.1} parent=19 // pred_region
          %p206 = scmp.lt.s32.totalorder %s28, 3
          %s207 = scalar_select %p206, %s28, 3
          %p208 = scmp.lt.s32.totalorder %s29, 0
          %s209 = scalar_select %p208, %s29, 0
          %s210 = smul.addr %s209, 4
          %s211 = smul.addr %s207, 4
          %s212 = sadd.s32 %s210, %s211
          %s213 = smul.addr %s212, 8
          %s214 = scalar_lea.vmem %s2, %s213
        $region24: #{tpu_custom_call.1} parent=19 // pred_fallthru
          _
        // Predicated region
        $region25: #{tpu_custom_call.1} parent=19 // pred_check
          %p215 = pneg %p115
        $region26: #{tpu_custom_call.1} parent=19 // pred_check_branch
          %217 = sbr.rel (%p215) target = $region28
        $region27: #{tpu_custom_call.1} parent=19 // pred_region
          %s218 = smul.u32 8, %s29
          %p219 = scmp.lt.s32.totalorder %s28, 3
          %s220 = scalar_select %p219, %s28, 3
          %p221 = scmp.lt.s32.totalorder %s218, 7
          %s222 = scalar_select %p221, %s218, 7
          %s223 = smul.addr %s220, 8
          %s224 = sadd.s32 %s222, %s223
          %s225 = smul.addr %s224, 8
          %s226 = scalar_lea.vmem %s3, %s225
          %s227 = smul.u32 8, %s29
        $region28: #{tpu_custom_call.1} parent=19 // pred_fallthru
          _
        // Predicated region
        $region29: #{tpu_custom_call.1} parent=19 // pred_check
          %p228 = pneg %p143
        $region30: #{tpu_custom_call.1} parent=19 // pred_check_branch
          %230 = sbr.rel (%p228) target = $region32
        $region31: #{tpu_custom_call.1} parent=19 // pred_region
          %s231 = smul.u32 2, %s27
          %p232 = scmp.lt.s32.totalorder %s28, 3
          %s233 = scalar_select %p232, %s28, 3
          %p234 = scmp.lt.s32.totalorder %s231, 1
          %s235 = scalar_select %p234, %s231, 1
          %s236 = smul.addr %s233, 2
          %s237 = sadd.s32 %s235, %s236
          %s238 = smul.addr %s237, 8
          %s239 = scalar_lea.vmem %s4, %s238
          %s240 = smul.u32 2, %s27
        $region32: #{tpu_custom_call.1} parent=19 // pred_fallthru
          _
      $region20: #{tpu_custom_call.1} parent=5 // pred_fallthru
        _
      %p241 = scmp.le.s32.totalorder 1, %s20
      %p242 = scmp.lt.s32.totalorder %s20, 5
      %p243 = pnand %p241, %p242
      %p244 = pneg %p243
      // Predicated region
      $region33: #{tpu_custom_call.1} parent=5 // pred_check
        _
      $region34: #{tpu_custom_call.1} parent=5 // pred_check_branch
        %246 = sbr.rel (%p243) target = $region36
      $region35: #{tpu_custom_call.1} parent=5 // pred_region
        %s247 = ssub.s32 %s20, 1
        %s248 = smul.u32 2, %s30
        %p249 = scmp.lt.s32.totalorder %s248, 1
        %s250 = scalar_select %p249, %s248, 1
        %s251 = smul.addr %s250, 8
        %s252 = scalar_lea.vmem %s1, %s251
        %p253 = pneg %p65
        %p254 = pneg %p62
        %p255 = scmp.lt.s32.totalorder %s31, 3
        %s256 = scalar_select %p255, %s31, 3
        %p257 = scmp.lt.s32.totalorder %s32, 0
        %s258 = scalar_select %p257, %s32, 0
        %s259 = smul.addr %s258, 4
        %s260 = smul.addr %s256, 4
        %s261 = sadd.s32 %s259, %s260
        %s262 = smul.addr %s261, 8
        %s263 = scalar_lea.vmem %s2, %s262
        %p264 = pneg %p93
        %p265 = pneg %p90
        %s266 = smul.u32 8, %s32
        %p267 = scmp.lt.s32.totalorder %s31, 3
        %s268 = scalar_select %p267, %s31, 3
        %p269 = scmp.lt.s32.totalorder %s266, 7
        %s270 = scalar_select %p269, %s266, 7
        %s271 = smul.addr %s268, 8
        %s272 = sadd.s32 %s270, %s271
        %s273 = smul.addr %s272, 8
        %s274 = scalar_lea.vmem %s3, %s273
        %p275 = pneg %p121
        %p276 = pneg %p118
        %s277 = smul.u32 2, %s30
        %p278 = scmp.lt.s32.totalorder %s31, 3
        %s279 = scalar_select %p278, %s31, 3
        %p280 = scmp.lt.s32.totalorder %s277, 1
        %s281 = scalar_select %p280, %s277, 1
        %s282 = smul.addr %s279, 2
        %s283 = sadd.s32 %s281, %s282
        %s284 = smul.addr %s283, 8
        %s285 = scalar_lea.vmem %s4, %s284
        %p286 = pneg %p149
        %p287 = pneg %p146
        %p288 = pneg %p175
        %p289 = pneg %p172
        %s290 = smul.u32 2, %s30
        %p291 = scmp.lt.s32.totalorder %s290, 1
        %s292 = scalar_select %p291, %s290, 1
        %s293 = smul.addr %s292, 8
        %s294 = scalar_lea.vmem %s1, %s293
        %s295 = smul.u32 2, %s30
        %p296 = scmp.lt.s32.totalorder %s31, 3
        %s297 = scalar_select %p296, %s31, 3
        %p298 = scmp.lt.s32.totalorder %s32, 0
        %s299 = scalar_select %p298, %s32, 0
        %s300 = smul.addr %s299, 4
        %s301 = smul.addr %s297, 4
        %s302 = sadd.s32 %s300, %s301
        %s303 = smul.addr %s302, 8
        %s304 = scalar_lea.vmem %s2, %s303
        %s305 = smul.u32 8, %s32
        %p306 = scmp.lt.s32.totalorder %s31, 3
        %s307 = scalar_select %p306, %s31, 3
        %p308 = scmp.lt.s32.totalorder %s305, 7
        %s309 = scalar_select %p308, %s305, 7
        %s310 = smul.addr %s307, 8
        %s311 = sadd.s32 %s309, %s310
        %s312 = smul.addr %s311, 8
        %s313 = scalar_lea.vmem %s3, %s312
        %s314 = smul.u32 8, %s32
        %s315 = smul.u32 2, %s30
        %p316 = scmp.lt.s32.totalorder %s31, 3
        %s317 = scalar_select %p316, %s31, 3
        %p318 = scmp.lt.s32.totalorder %s315, 1
        %s319 = scalar_select %p318, %s315, 1
        %s320 = smul.addr %s317, 2
        %s321 = sadd.s32 %s319, %s320
        %s322 = smul.addr %s321, 8
        %s323 = scalar_lea.vmem %s4, %s322
        %s324 = smul.u32 2, %s30
        %s325 = smul.u32 2, %s30
        %p326 = scmp.eq.s32.totalorder %s31, 0
        %p327 = scmp.eq.s32.totalorder %s32, 0
        %p328 = pnand %p326, %p327
        %p329 = pneg %p328
        // Predicated region
        $region37: #{tpu_custom_call.1} parent=35 // pred_check
          _
        $region38: #{tpu_custom_call.1} parent=35 // pred_check_branch
          %331 = sbr.rel (%p328) target = $region40
        $region39: #{tpu_custom_call.1} parent=35 // pred_region
          %vm332 = vcmask 261120
          %333 = vst.msk [vmem:[#allocation2] sm:$0xff] %vm332, 0.0
          %334 = vst.msk [vmem:[#allocation2 + $0x8] sm:$0xff] %vm332, 0.0
        $region40: #{tpu_custom_call.1} parent=35 // pred_fallthru
          _
        %s335 = smul.u32 %s30, 4
        %s336 = sadd.s32 %s335, %s31
        %s337 = sld [smem:[#allocation4 + %s336]]
        %p338 = scmp.ne.s32.totalorder %s337, 0
        // Predicated region
        $region41: #{tpu_custom_call.1} parent=35 // pred_check
          %p339 = pneg %p338
        $region42: #{tpu_custom_call.1} parent=35 // pred_check_branch
          %341 = sbr.rel (%p339) target = $region44
        $region43: #{tpu_custom_call.1} parent=35 // pred_region
          %v342 = vld [vmem:[%s294] sm:$0xff]
          %v343 = vld [vmem:[%s294 + $0x8] sm:$0xff]
          %v344 = vld [vmem:[%s304] sm:$0xff]
          %v345 = vld [vmem:[%s304 + $0x8] sm:$0xff]
          %v346 = vld [vmem:[%s304 + $0x10] sm:$0xff]
          %v347 = vld [vmem:[%s304 + $0x18] sm:$0xff]
          %v348 = vld [vmem:[%s313] sm:$0xff]
          %v349 = vld [vmem:[%s313 + $0x8] sm:$0xff]
          %v350 = vld [vmem:[%s313 + $0x10] sm:$0xff]
          %v351 = vld [vmem:[%s313 + $0x18] sm:$0xff]
          %v352 = vld [vmem:[%s313 + $0x20] sm:$0xff]
          %v353 = vld [vmem:[%s313 + $0x28] sm:$0xff]
          %v354 = vld [vmem:[%s313 + $0x30] sm:$0xff]
          %v355 = vld [vmem:[%s313 + $0x38] sm:$0xff]
          %vm356 = vcmask 261120
          %v358 = vsel %vm356, %v342, 0
          %v361 = vsel %vm356, %v343, 0
          %363 = vmatpush.msra.mxu0 0.0
          %364 = vmatpush.msra.mxu0 0.0
          %365 = vmatpush.msra.mxu0 0.0
          %366 = vmatpush.msra.mxu0 0.0
          %367 = vmatpush.msra.mxu0 0.0
          %368 = vmatpush.msra.mxu0 0.0
          %369 = vmatpush.msra.mxu0 0.0
          %370 = vmatpush.msra.mxu0 0.0
          %371 = vmatpush.msra.mxu0 0.0
          %372 = vmatpush.msra.mxu0 0.0
          %373 = vmatpush.msra.mxu0 0.0
          %374 = vmatpush.msra.mxu0 0.0
          %375 = vmatpush.msra.mxu0 %v347
          %376 = vmatpush.msra.mxu0 %v346
          %377 = vmatpush.msra.mxu0 %v345
          %378 = vmatpush.msra.mxu0 %v344
          %379 = vmatmul.f32.gmra.mxu0 %v358
          %v380 = vpop.f32.mrf.mxu0
          %v381 = vadd.f32 0.0, %v380
          %382 = vmatmul.f32.gmra.mxu0 %v361
          %v383 = vpop.f32.mrf.mxu0
          %v384 = vadd.f32 0.0, %v383
          %385 = vdwg.mxu0
          %v386 = vxor.u32 %v381, 2147483648
          %v387 = vxor.u32 %v384, 2147483648
          %v388 = vmul.f32 %v386, 1.442695
          %v389 = vpow.pop %v388
          %v390 = vmul.f32 %v387, 1.442695
          %v391 = vpow.pop %v390
          %v392 = vadd.f32 %v389, 1.0
          %v393 = vadd.f32 %v391, 1.0
          %v394 = vrcp.pop %v392
          %v395 = vmul.f32 %v392, %v394
          %v396 = vsub.f32 1.0, %v395
          %v397 = vmul.f32 %v394, %v396
          %v398 = vadd.f32 %v394, %v397
          %vm399 = vweird.f32 %v392
          %vm400 = vweird.f32 %v394
          %vm401 = vmor %vm399, %vm400
          %v402 = vsel %vm401, %v394, %v398
          %v403 = vand.u32 2147483647, %v392
          %vm404 = vcmp.eq.f32.partialorder %v403, 8.507059e+37
          %v405 = vand.u32 %v392, 2147483648
          %v406 = vor.u32 1.1754944e-38, %v405
          %v407 = vsel %vm404, %v406, %v402
          %v408 = vmul.f32 1.0, %v407
          %v409 = vrcp.pop %v393
          %v410 = vmul.f32 %v393, %v409
          %v411 = vsub.f32 1.0, %v410
          %v412 = vmul.f32 %v409, %v411
          %v413 = vadd.f32 %v409, %v412
          %vm414 = vweird.f32 %v393
          %vm415 = vweird.f32 %v409
          %vm416 = vmor %vm414, %vm415
          %v417 = vsel %vm416, %v409, %v413
          %v418 = vand.u32 2147483647, %v393
          %vm419 = vcmp.eq.f32.partialorder %v418, 8.507059e+37
          %v420 = vand.u32 %v393, 2147483648
          %v421 = vor.u32 1.1754944e-38, %v420
          %v422 = vsel %vm419, %v421, %v417
          %v423 = vmul.f32 1.0, %v422
          %v424 = vmul.f32 %v381, %v408
          %v425 = vmul.f32 %v384, %v423
          %428 = vrot.lane.b32.xlu0 %v381, 64
          %v429 = vpop.permute.xlu0 %428
          %430 = vrot.lane.b32.xlu0 %v384, 64
          %v431 = vpop.permute.xlu0 %430
          %v434 = vmul.f32 %v424, %v429
          %v435 = vmul.f32 %v425, %v431
          %vm436 = vcmask 523264
          %v438 = vsel %vm436, %v434, 0
          %v441 = vsel %vm436, %v435, 0
          %443 = vmatpush.msra.mxu0 0.0
          %444 = vmatpush.msra.mxu0 0.0
          %445 = vmatpush.msra.mxu0 0.0
          %446 = vmatpush.msra.mxu0 0.0
          %447 = vmatpush.msra.mxu0 0.0
          %448 = vmatpush.msra.mxu0 0.0
          %449 = vmatpush.msra.mxu0 0.0
          %450 = vmatpush.msra.mxu0 0.0
          %451 = vmatpush.msra.mxu0 %v355
          %452 = vmatpush.msra.mxu0 %v354
          %453 = vmatpush.msra.mxu0 %v353
          %454 = vmatpush.msra.mxu0 %v352
          %455 = vmatpush.msra.mxu0 %v351
          %456 = vmatpush.msra.mxu0 %v350
          %457 = vmatpush.msra.mxu0 %v349
          %458 = vmatpush.msra.mxu0 %v348
          %459 = vmatmul.f32.gmra.mxu0 %v438
          %v460 = vpop.f32.mrf.mxu0
          %v461 = vadd.f32 0.0, %v460
          %462 = vmatmul.f32.gmra.mxu0 %v441
          %v463 = vpop.f32.mrf.mxu0
          %v464 = vadd.f32 0.0, %v463
          %465 = vdwg.mxu0
          %v466 = vld [vmem:[#allocation2] sm:$0xff]
          %v467 = vld [vmem:[#allocation2 + $0x8] sm:$0xff]
          %v468 = vld [vmem:[%s323] sm:$0xff]
          %v469 = vld [vmem:[%s323 + $0x8] sm:$0xff]
          %471 = vset.pattern.permute.xlu0 0
          %472 = vperm.xlu0 %471, %v468
          %v473 = vpop.permute.xlu0 %472
          %476 = vset.pattern.permute.xlu0 0
          %477 = vperm.xlu0 %476, %v469
          %v478 = vpop.permute.xlu0 %477
          %v480 = vmul.f32 %v473, %v461
          %v481 = vmul.f32 %v478, %v464
          %v482 = vadd.f32 %v466, %v480
          %v483 = vadd.f32 %v467, %v481
          %484 = vst.msk [vmem:[#allocation2] sm:$0xff] %vm356, %v482
          %485 = vst.msk [vmem:[#allocation2 + $0x8] sm:$0xff] %vm356, %v483
        $region44: #{tpu_custom_call.1} parent=35 // pred_fallthru
          _
        %p486 = scmp.eq.s32.totalorder %s31, 3
        %p487 = pnand %p486, %p327
        %p488 = pneg %p487
        // Predicated region
        $region45: #{tpu_custom_call.1} parent=35 // pred_check
          _
        $region46: #{tpu_custom_call.1} parent=35 // pred_check_branch
          %490 = sbr.rel (%p487) target = $region48
        $region47: #{tpu_custom_call.1} parent=35 // pred_region
          %v491 = vld [vmem:[#allocation2] sm:$0xff]
          %v492 = vld [vmem:[#allocation2 + $0x8] sm:$0xff]
          %vm493 = vcmask 261120
          %494 = vst.msk [vmem:[#allocation5] sm:$0xff] %vm493, %v491
          %495 = vst.msk [vmem:[#allocation5 + $0x8] sm:$0xff] %vm493, %v492
        $region48: #{tpu_custom_call.1} parent=35 // pred_fallthru
          _
        // Predicated region
        $region49: #{tpu_custom_call.1} parent=35 // pred_check
          %p496 = pneg %p172
        $region50: #{tpu_custom_call.1} parent=35 // pred_check_branch
          %498 = sbr.rel (%p496) target = $region52
        $region51: #{tpu_custom_call.1} parent=35 // pred_region
          %s499 = smul.u32 2, %s30
          %501 = vsyncadd [#allocation6], 0
          %s502 = smul.addr %s499, 8
          %s503 = scalar_lea.hbm %s5, %s502
          %s504 = sshll.u32 [#allocation5], 4
          %s505 = int_to_ptr.vmem [resolvable:$true] %s504
          %s506 = sshll.u32 %s503, 4
          %s507 = int_to_ptr.hbm [resolvable:$true] %s506
          %512 = dma.vmem_to_hbm [thread:$0]  %s505, 256, %s507, [#allocation6], 128, 128, 8
        $region52: #{tpu_custom_call.1} parent=35 // pred_fallthru
          _
        // Predicated region
        $region53: #{tpu_custom_call.1} parent=35 // pred_check
          %p513 = pneg %p172
        $region54: #{tpu_custom_call.1} parent=35 // pred_check_branch
          %515 = sbr.rel (%p513) target = $region56
        $region55: #{tpu_custom_call.1} parent=35 // pred_region
          %517 = dma.done [#allocation6], 256
        $region56: #{tpu_custom_call.1} parent=35 // pred_fallthru
          _
      $region36: #{tpu_custom_call.1} parent=5 // pred_fallthru
        _
      %p518 = scmp.le.s32.totalorder 2, %s20
      // Predicated region
      $region57: #{tpu_custom_call.1} parent=5 // pred_check
        %p519 = pneg %p518
      $region58: #{tpu_custom_call.1} parent=5 // pred_check_branch
        %521 = sbr.rel (%p519) target = $region60
      $region59: #{tpu_custom_call.1} parent=5 // pred_region
        %s522 = ssub.s32 %s20, 2
      $region60: #{tpu_custom_call.1} parent=5 // pred_fallthru
        _
    $region6: #{tpu_custom_call.1} parent=1 // loop_footer
      %s24 = sadd.s32 1, %s20
    $region7: #{tpu_custom_call.1} parent=1 // loop_footer_branch
      %19 = sbr.rel target = $region3
    $region8: #{tpu_custom_call.1} parent=1 // loop_exit
      _
    %523 = vsyncpa [#allocation6], 1
    %s524 = scalar_lea.sflag [#allocation6], 1
    %525 = vsyncpa %s524, 1

</llo_original>
